<compile_context>
chip_gen: v6e
topology: v6e:2x2x1
jax: 0.10.0
libtpu: 0.0.40
codegen_flags: <defaults>
</compile_context>

<pallas_src>
import jax
import jax.numpy as jnp
from jax.experimental import pallas as pl
from jax.experimental.pallas import tpu as pltpu

_LANE = 128


def _round_up(x, m):
    return ((x + m - 1) // m) * m


def _choose_tile_m(M, per_row_bytes, vmem_budget):
    """Pick the M (frame) tile size.

    * biggest tile that keeps the double-buffered working set under `vmem_budget`
      (capped at 2048 rows; per-grid-step overhead ~0.35us favours large tiles)
    * 16-row granularity (bf16 sublane packing; avoids masked sublanes on v5e)
    * >= 2 grid steps whenever M allows, so ("parallel",) can shard the grid across
      both v7x TensorCores
    * tile ~= ceil(M / n_steps), which bounds tail-padding waste for awkward M.
    """
    if M <= 32:
        return _round_up(M, 16)
    cap = max(16, min(2048, (max(vmem_budget, per_row_bytes) // max(per_row_bytes, 1)) // 16 * 16))
    n_steps = max(2, -(-M // cap))
    return max(16, min(cap, _round_up(-(-M // n_steps), 16)))


def _make_prenet_kernel(num_layers, compute_dtype):
    """Fused kernel: x -> [matmul + bias + ReLU (+ dropout)] * num_layers -> out.

    Args layout: (x_ref, w0_ref, b0_ref, w1_ref, b1_ref, ..., o_ref).
    The intermediate activation is kept as an on-chip value (never written to HBM).
    """

    def kernel(x_ref, *args):
        o_ref = args[2 * num_layers]
        h = x_ref[...].astype(compute_dtype)          # (TILE_M, Din_p)
        for l in range(num_layers):
            w = args[2 * l][...]                      # (Din_l_p, Dout_l_p), VMEM-resident
            b = args[2 * l + 1][...]                  # (1, Dout_l_p), f32
            y = jnp.dot(h, w, preferred_element_type=jnp.float32)   # MXU, f32 acc
            y = jnp.maximum(y + b, 0.0)               # bias + ReLU epilogue on the VPU
            # nn.Dropout in eval mode == identity.
            # TODO(synk): training-mode dropout mask via pltpu.prng_random_bits.
            if l + 1 < num_layers:
                h = y.astype(compute_dtype)
            else:
                o_ref[...] = y.astype(o_ref.dtype)

    return kernel


def init_prenet_params(key, input_size, num_layers, hidden_size, dtype=jnp.float32):
    """Deterministic synthetic init mirroring nn.Conv1d(in, out, kernel_size=1).
    PyTorch Conv1d weight is (out, in, 1); we store the transposed (in, out)
    linear-equivalent weight directly."""
    input_sizes = [input_size] + [hidden_size] * (num_layers - 1)
    output_sizes = [hidden_size] * num_layers
    weights, biases = [], []
    for i, (din, dout) in enumerate(zip(input_sizes, output_sizes)):
        kw, kb = jax.random.split(jax.random.fold_in(key, i))
        bound = 1.0 / (din ** 0.5)  # PyTorch Conv1d default uniform bound
        weights.append(jax.random.uniform(kw, (din, dout), dtype, minval=-bound, maxval=bound))
        biases.append(jax.random.uniform(kb, (dout,), dtype, minval=-bound, maxval=bound))
    return weights, biases


def prenet_forward(x, weights, biases, *, compute_dtype=jnp.bfloat16,
                   out_dtype=jnp.bfloat16):
    """x: (B, T, input_size) -> (B, T, hidden_size).

    Equivalent to (eval mode):
        h = x.transpose(1, 2)
        for conv in layers: h = dropout(relu(conv(h)))
        return h.transpose(1, 2)
    with kernel_size=1 convs.

    compute_dtype (default bf16) is the MXU input precision for x / weights and the
    inter-layer activation; accumulation, bias add and ReLU are always f32.
    out_dtype (default bf16) is the HBM writeback precision.  Pass jnp.float32 for
    both to reproduce f32 nn.Conv1d numerics exactly.
    """
    B, T, Din = x.shape
    num_layers = len(weights)
    M = B * T

    # --- channel dims padded to lane multiples (zero-padding is inert) -----------
    dins = [w.shape[0] for w in weights]
    douts = [w.shape[1] for w in weights]
    dins_p = [_round_up(d, _LANE) for d in dins]
    douts_p = [_round_up(d, _LANE) for d in douts]
    Hout, Hp = douts[-1], douts_p[-1]

    # --- adaptive row tiling (VMEM-checked) ---------------------------------------
    in_itemsize = max(jnp.dtype(compute_dtype).itemsize, x.dtype.itemsize)
    out_itemsize = jnp.dtype(out_dtype).itemsize
    w_itemsize = jnp.dtype(compute_dtype).itemsize
    resident_w_bytes = sum(2 * (dins_p[l] * douts_p[l] * w_itemsize + douts_p[l] * 4)
                           for l in range(num_layers))
    per_row_bytes = (2 * dins_p[0] * in_itemsize          # double-buffered x tile
                     + 2 * Hp * out_itemsize              # double-buffered out tile
                     + 2 * max(douts_p) * 4)              # live f32 activations
    TILE_M = _choose_tile_m(M, per_row_bytes, (24 << 20) - resident_w_bytes)
    Mp = _round_up(M, TILE_M)

    # --- prepare inputs ------------------------------------------------------------
    x2 = x.reshape(M, Din)
    if (Mp != M) or (dins_p[0] != Din):
        # Pad + cast in one pass (padded rows/cols are zero -> math is unchanged).
        x2 = jnp.pad(x2, ((0, Mp - M), (0, dins_p[0] - Din))).astype(compute_dtype)
    # else: pass x through untouched; the kernel casts it in-register (saves an
    # extra HBM sweep vs a wrapper-side cast pass).

    wb_inputs = []
    in_specs = [pl.BlockSpec((TILE_M, dins_p[0]), lambda i: (i, 0))]
    for l in range(num_layers):
        wp = jnp.pad(weights[l],
                     ((0, dins_p[l] - dins[l]), (0, douts_p[l] - douts[l]))
                     ).astype(compute_dtype)
        bp = jnp.pad(biases[l], (0, douts_p[l] - douts[l])
                     ).astype(jnp.float32).reshape(1, douts_p[l])
        wb_inputs += [wp, bp]
        in_specs += [
            pl.BlockSpec((dins_p[l], douts_p[l]), lambda i: (0, 0)),  # VMEM-resident
            pl.BlockSpec((1, douts_p[l]), lambda i: (0, 0)),          # VMEM-resident
        ]

    flops = sum(2 * Mp * dins_p[l] * douts_p[l] for l in range(num_layers))
    bytes_accessed = (x2.size * x2.dtype.itemsize
                      + sum(a.size * a.dtype.itemsize for a in wb_inputs)
                      + Mp * Hp * out_itemsize)

    out = pl.pallas_call(
        _make_prenet_kernel(num_layers, compute_dtype),
        out_shape=jax.ShapeDtypeStruct((Mp, Hp), out_dtype),
        grid=(Mp // TILE_M,),
        in_specs=in_specs,
        out_specs=pl.BlockSpec((TILE_M, Hp), lambda i: (i, 0)),
        compiler_params=pltpu.CompilerParams(
            dimension_semantics=("parallel",),   # 2 TCs on v7x; neutral on v5e/v6e
            vmem_limit_bytes=32 << 20,           # fits v7x's 64 MiB physical VMEM
        ),
        cost_estimate=pl.CostEstimate(
            flops=int(flops), transcendentals=0, bytes_accessed=int(bytes_accessed)
        ),
    )(x2, *wb_inputs)

    return out[:M, :Hout].reshape(B, T, Hout)


if __name__ == "__main__":
    key = jax.random.PRNGKey(0)

    # Small shapes consistent with the module's forward: (B, T, input_size)
    B, T = 2, 8
    input_size, num_layers, hidden_size, dropout = 16, 2, 32, 0.5

    k_x, k_p = jax.random.split(key)
    x = jax.random.normal(k_x, (B, T, input_size), dtype=jnp.float32)
    weights, biases = init_prenet_params(k_p, input_size, num_layers, hidden_size)

    out = prenet_forward(x, weights, biases)   # bf16 compute / bf16 output (defaults)
    jax.block_until_ready(out)

    # Pure-JAX reference replicating the kernel's exact numerics: bf16 inputs,
    # weights AND inter-layer activations; f32 accumulation + bias + ReLU; bf16 out.
    h = x.reshape(B * T, input_size).astype(jnp.bfloat16)
    for w, b in zip(weights, biases):
        y = jnp.dot(h, w.astype(jnp.bfloat16), preferred_element_type=jnp.float32)
        y = jnp.maximum(y + b.astype(jnp.float32), 0.0)
        h = y.astype(jnp.bfloat16)   # matches the kernel's inter-layer / output cast
    ref = h.reshape(B, T, hidden_size)

    assert out.shape == (B, T, hidden_size)
    assert out.dtype == jnp.bfloat16
    assert jnp.allclose(out.astype(jnp.float32), ref.astype(jnp.float32),
                        atol=2e-2, rtol=2e-2)

    print("KERNEL_OK")
</pallas_src>

<mosaic_0001>
module attributes {stable_mosaic.version = 11 : i64} {
  func.func @kernel(%arg0: i32, %arg1: memref<16x128xbf16, #tpu.memory_space<vmem>>, %arg2: memref<128x128xbf16, #tpu.memory_space<vmem>>, %arg3: memref<1x128xf32, #tpu.memory_space<vmem>>, %arg4: memref<128x128xbf16, #tpu.memory_space<vmem>>, %arg5: memref<1x128xf32, #tpu.memory_space<vmem>>, %arg6: memref<16x128xbf16, #tpu.memory_space<vmem>>) attributes {dimension_semantics = [#tpu.dimension_semantics<parallel>], iteration_bounds = array<i64: 1>, scalar_prefetch = 0 : i64, scratch_operands = 0 : i64, tpu.core_type = #tpu.core_type<tc>, window_params = [{transform_indices = @transform_0, window_bounds = array<i64: 16, 128>}, {pipeline_mode = #tpu.pipeline_mode<synchronous>, transform_indices = @transform_1, window_bounds = array<i64: 128, 128>}, {pipeline_mode = #tpu.pipeline_mode<synchronous>, transform_indices = @transform_2, window_bounds = array<i64: 1, 128>}, {pipeline_mode = #tpu.pipeline_mode<synchronous>, transform_indices = @transform_3, window_bounds = array<i64: 128, 128>}, {pipeline_mode = #tpu.pipeline_mode<synchronous>, transform_indices = @transform_4, window_bounds = array<i64: 1, 128>}, {transform_indices = @transform_5, window_bounds = array<i64: 16, 128>}]} {
    %c0 = arith.constant 0 : index
    %c0_0 = arith.constant 0 : index
    %0 = vector.load %arg1[%c0, %c0_0] : memref<16x128xbf16, #tpu.memory_space<vmem>>, vector<16x128xbf16>
    %c0_1 = arith.constant 0 : index
    %c0_2 = arith.constant 0 : index
    %1 = vector.load %arg2[%c0_1, %c0_2] : memref<128x128xbf16, #tpu.memory_space<vmem>>, vector<128x128xbf16>
    %c0_3 = arith.constant 0 : index
    %c0_4 = arith.constant 0 : index
    %2 = vector.load %arg3[%c0_3, %c0_4] : memref<1x128xf32, #tpu.memory_space<vmem>>, vector<1x128xf32>
    %cst = arith.constant dense<0.000000e+00> : vector<16x128xf32>
    %3 = tpu.matmul %0, %1, %cst {dimension_numbers = #tpu.dot_dimension_numbers<[1], [0], [0], [1], [0, 0, 1, 1], [], []>} : vector<16x128xbf16>, vector<128x128xbf16>, vector<16x128xf32> -> vector<16x128xf32>
    %4 = vector.broadcast %2 : vector<1x128xf32> to vector<16x128xf32>
    %5 = arith.addf %3, %4 : vector<16x128xf32>
    %cst_5 = arith.constant 0.000000e+00 : f32
    %6 = vector.broadcast %cst_5 : f32 to vector<16x128xf32>
    %7 = arith.maximumf %5, %6 : vector<16x128xf32>
    %8 = arith.truncf %7 : vector<16x128xf32> to vector<16x128xbf16>
    %c0_6 = arith.constant 0 : index
    %c0_7 = arith.constant 0 : index
    %9 = vector.load %arg4[%c0_6, %c0_7] : memref<128x128xbf16, #tpu.memory_space<vmem>>, vector<128x128xbf16>
    %c0_8 = arith.constant 0 : index
    %c0_9 = arith.constant 0 : index
    %10 = vector.load %arg5[%c0_8, %c0_9] : memref<1x128xf32, #tpu.memory_space<vmem>>, vector<1x128xf32>
    %cst_10 = arith.constant dense<0.000000e+00> : vector<16x128xf32>
    %11 = tpu.matmul %8, %9, %cst_10 {dimension_numbers = #tpu.dot_dimension_numbers<[1], [0], [0], [1], [0, 0, 1, 1], [], []>} : vector<16x128xbf16>, vector<128x128xbf16>, vector<16x128xf32> -> vector<16x128xf32>
    %12 = vector.broadcast %10 : vector<1x128xf32> to vector<16x128xf32>
    %13 = arith.addf %11, %12 : vector<16x128xf32>
    %cst_11 = arith.constant 0.000000e+00 : f32
    %14 = vector.broadcast %cst_11 : f32 to vector<16x128xf32>
    %15 = arith.maximumf %13, %14 : vector<16x128xf32>
    %16 = arith.truncf %15 : vector<16x128xf32> to vector<16x128xbf16>
    %c0_12 = arith.constant 0 : index
    %c0_13 = arith.constant 0 : index
    %17 = vector.load %arg6[%c0_12, %c0_13] : memref<16x128xbf16, #tpu.memory_space<vmem>>, vector<16x128xbf16>
    tpu.vector_store %arg6[%c0_12, %c0_13], %16 {strides = array<i32>} : memref<16x128xbf16, #tpu.memory_space<vmem>>, vector<16x128xbf16>,
    return
  }
  func.func @transform_0(%arg0: i32) -> (i32, i32) {
    %c0_i32 = arith.constant 0 : i32
    %c0_i32_0 = arith.constant 0 : i32
    return %arg0, %c0_i32 : i32, i32
  }
  func.func @transform_1(%arg0: i32) -> (i32, i32) {
    %c0_i32 = arith.constant 0 : i32
    %c0_i32_0 = arith.constant 0 : i32
    %c0_i32_1 = arith.constant 0 : i32
    return %c0_i32, %c0_i32_0 : i32, i32
  }
  func.func @transform_2(%arg0: i32) -> (i32, i32) {
    %c0_i32 = arith.constant 0 : i32
    %c0_i32_0 = arith.constant 0 : i32
    %c0_i32_1 = arith.constant 0 : i32
    return %c0_i32, %c0_i32_0 : i32, i32
  }
  func.func @transform_3(%arg0: i32) -> (i32, i32) {
    %c0_i32 = arith.constant 0 : i32
    %c0_i32_0 = arith.constant 0 : i32
    %c0_i32_1 = arith.constant 0 : i32
    return %c0_i32, %c0_i32_0 : i32, i32
  }
  func.func @transform_4(%arg0: i32) -> (i32, i32) {
    %c0_i32 = arith.constant 0 : i32
    %c0_i32_0 = arith.constant 0 : i32
    %c0_i32_1 = arith.constant 0 : i32
    return %c0_i32, %c0_i32_0 : i32, i32
  }
  func.func @transform_5(%arg0: i32) -> (i32, i32) {
    %c0_i32 = arith.constant 0 : i32
    %c0_i32_0 = arith.constant 0 : i32
    return %arg0, %c0_i32 : i32, i32
  }
}

</mosaic_0001>

<llo_original>
// kernel: tpu_custom_call.1
$region0: #{tpu_custom_call.1}
  #allocation0 [shape = 'u32[]', space=smem, size = 0x4, offset = 0x4, fixed_abs, tag = 'smem constant byte address 0x4 - core index']
  #allocation1 [shape = 'u32[144,128]{1,0:T(1,128)}', space=vmem, size = 0x12000, scoped, tag = 'internal scratch']
  %s0 = inlined_call_operand.hbm [shape: bf16[16,128], index: 0, kind: input, shape index: {}]
  %s1 = inlined_call_operand.hbm [shape: bf16[128,128], index: 1, kind: input, shape index: {}]
  %s2 = inlined_call_operand.vmem [shape: f32[1,128], index: 2, kind: input, shape index: {}]
  %s3 = inlined_call_operand.hbm [shape: bf16[128,128], index: 3, kind: input, shape index: {}]
  %s4 = inlined_call_operand.vmem [shape: f32[1,128], index: 4, kind: input, shape index: {}]
  %s5 = inlined_call_operand.hbm [shape: bf16[16,128], index: 5, kind: output, shape index: {}]
  %s6 = sld [smem:[#allocation0]]
  $region42: #{tpu_custom_call.1} parent=0
    _
  %s8 = ssub.s32 1, %s6
  %s9 = scalar_select 0, %s8, %s6
  $region1: #{tpu_custom_call.1} parent=0
    #allocation2 [shape = 'u8[4096]{0}', space=vmem, size = 0x1000, scoped, tag = 'input window, operand 0, single buffered']
    #allocation3 [shape = 's32[1]{0}', space=sflag, size = 0x4, scoped, tag = 'scoped memory for tpu_custom_call.1']
    #allocation4 [shape = 's32[1]{0}', space=sflag, size = 0x4, scoped, tag = 'scoped memory for tpu_custom_call.1']
    #allocation5 [shape = 'u8[32768]{0}', space=vmem, size = 0x8000, scoped, tag = 'input window, operand 1, single buffered']
    #allocation6 [shape = 's32[1]{0}', space=sflag, size = 0x4, scoped, tag = 'scoped memory for tpu_custom_call.1']
    #allocation7 [shape = 'u8[32768]{0}', space=vmem, size = 0x8000, scoped, tag = 'input window, operand 3, single buffered']
    #allocation8 [shape = 'u8[4096]{0}', space=vmem, size = 0x1000, scoped, tag = 'output window, operand 0, single buffered']
    %10 = vsyncpa [#allocation3], 0
    %11 = vsyncpa [#allocation6], 0
    %12 = vsyncpa [#allocation4], 0
    // Predicated region
    $region2: #{tpu_custom_call.1} parent=1 // pred_check
      _
    $region3: #{tpu_custom_call.1} parent=1 // pred_check_branch
      %14 = sbr.rel (0) target = $region5
    $region4: #{tpu_custom_call.1} parent=1 // pred_region
      %s16 = ssub.s32 128, 128
      %17 = vsyncadd [#allocation3], %s16
      %s18 = sshll.u32 [#allocation2], 4
      %s19 = int_to_ptr.vmem [resolvable:$true] %s18
      %24 = dma.hbm_to_vmem [thread:$0]  %s0, 128, %s19, [#allocation3], 64, 64, 4
    $region5: #{tpu_custom_call.1} parent=1 // pred_fallthru
      _
    // Predicated region
    $region6: #{tpu_custom_call.1} parent=1 // pred_check
      _
    $region7: #{tpu_custom_call.1} parent=1 // pred_check_branch
      %26 = sbr.rel (0) target = $region9
    $region8: #{tpu_custom_call.1} parent=1 // pred_region
      %s28 = ssub.s32 1024, 1024
      %29 = vsyncadd [#allocation6], %s28
      %s30 = sshll.u32 [#allocation5], 4
      %s31 = int_to_ptr.vmem [resolvable:$true] %s30
      %36 = dma.hbm_to_vmem [thread:$0]  %s1, 1024, %s31, [#allocation6], 64, 64, 4
    $region9: #{tpu_custom_call.1} parent=1 // pred_fallthru
      _
    // Predicated region
    $region10: #{tpu_custom_call.1} parent=1 // pred_check
      _
    $region11: #{tpu_custom_call.1} parent=1 // pred_check_branch
      %38 = sbr.rel (0) target = $region13
    $region12: #{tpu_custom_call.1} parent=1 // pred_region
      _
    $region13: #{tpu_custom_call.1} parent=1 // pred_fallthru
      _
    // Predicated region
    $region14: #{tpu_custom_call.1} parent=1 // pred_check
      _
    $region15: #{tpu_custom_call.1} parent=1 // pred_check_branch
      %40 = sbr.rel (0) target = $region17
    $region16: #{tpu_custom_call.1} parent=1 // pred_region
      %s42 = ssub.s32 1024, 1024
      %43 = vsyncadd [#allocation6], %s42
      %s44 = sshll.u32 [#allocation7], 4
      %s45 = int_to_ptr.vmem [resolvable:$true] %s44
      %50 = dma.hbm_to_vmem [thread:$0]  %s3, 1024, %s45, [#allocation6], 64, 64, 4
    $region17: #{tpu_custom_call.1} parent=1 // pred_fallthru
      _
    // Predicated region
    $region18: #{tpu_custom_call.1} parent=1 // pred_check
      _
    $region19: #{tpu_custom_call.1} parent=1 // pred_check_branch
      %52 = sbr.rel (0) target = $region21
    $region20: #{tpu_custom_call.1} parent=1 // pred_region
      _
    $region21: #{tpu_custom_call.1} parent=1 // pred_fallthru
      _
    // Predicated region
    $region22: #{tpu_custom_call.1} parent=1 // pred_check
      _
    $region23: #{tpu_custom_call.1} parent=1 // pred_check_branch
      %54 = sbr.rel (0) target = $region25
    $region24: #{tpu_custom_call.1} parent=1 // pred_region
      %55 = dma.done [#allocation3], 128
    $region25: #{tpu_custom_call.1} parent=1 // pred_fallthru
      _
    // Predicated region
    $region26: #{tpu_custom_call.1} parent=1 // pred_check
      _
    $region27: #{tpu_custom_call.1} parent=1 // pred_check_branch
      %57 = sbr.rel (0) target = $region29
    $region28: #{tpu_custom_call.1} parent=1 // pred_region
      %58 = dma.done [#allocation6], 1024
    $region29: #{tpu_custom_call.1} parent=1 // pred_fallthru
      _
    // Predicated region
    $region30: #{tpu_custom_call.1} parent=1 // pred_check
      _
    $region31: #{tpu_custom_call.1} parent=1 // pred_check_branch
      %60 = sbr.rel (0) target = $region33
    $region32: #{tpu_custom_call.1} parent=1 // pred_region
      %61 = dma.done [#allocation6], 1024
    $region33: #{tpu_custom_call.1} parent=1 // pred_fallthru
      _
    %v63 = vld [vmem:[#allocation2] sm:$0xf]
    %v64 = vld [vmem:[#allocation2 + $0x4] sm:$0xf]
    %v65 = vld [vmem:[#allocation5] sm:$0xf]
    %v66 = vld [vmem:[#allocation5 + $0x4] sm:$0xf]
    %v67 = vld [vmem:[#allocation5 + $0x8] sm:$0xf]
    %v68 = vld [vmem:[#allocation5 + $0xc] sm:$0xf]
    %v69 = vld [vmem:[#allocation5 + $0x10] sm:$0xf]
    %v70 = vld [vmem:[#allocation5 + $0x14] sm:$0xf]
    %v71 = vld [vmem:[#allocation5 + $0x18] sm:$0xf]
    %v72 = vld [vmem:[#allocation5 + $0x1c] sm:$0xf]
    %v73 = vld [vmem:[#allocation5 + $0x20] sm:$0xf]
    %v74 = vld [vmem:[#allocation5 + $0x24] sm:$0xf]
    %v75 = vld [vmem:[#allocation5 + $0x28] sm:$0xf]
    %v76 = vld [vmem:[#allocation5 + $0x2c] sm:$0xf]
    %v77 = vld [vmem:[#allocation5 + $0x30] sm:$0xf]
    %v78 = vld [vmem:[#allocation5 + $0x34] sm:$0xf]
    %v79 = vld [vmem:[#allocation5 + $0x38] sm:$0xf]
    %v80 = vld [vmem:[#allocation5 + $0x3c] sm:$0xf]
    %v81 = vld [vmem:[%s2] sm:$0x1]
    %v83 = vlaneseq
    %v84 = vshrl.u32 %v83, 7
    %v85 = vsub.s32 0, %v84
    %v86 = vrot.slane %v81, %v85
    %v90 = vunpack.c.l.b16 %v63
    %v91 = vunpack.c.l.b16 %v64
    %v92 = vpack.c.b16 %v91, %v90
    %v110 = vunpack.c.l.b16 %v65
    %v111 = vunpack.c.l.b16 %v66
    %v112 = vunpack.c.l.b16 %v67
    %v113 = vunpack.c.l.b16 %v68
    %v114 = vunpack.c.l.b16 %v69
    %v115 = vunpack.c.l.b16 %v70
    %v116 = vunpack.c.l.b16 %v71
    %v117 = vunpack.c.l.b16 %v72
    %v118 = vunpack.c.l.b16 %v73
    %v119 = vunpack.c.l.b16 %v74
    %v120 = vunpack.c.l.b16 %v75
    %v121 = vunpack.c.l.b16 %v76
    %v122 = vunpack.c.l.b16 %v77
    %v123 = vunpack.c.l.b16 %v78
    %v124 = vunpack.c.l.b16 %v79
    %v125 = vunpack.c.l.b16 %v80
    %v126 = vpack.c.b16 %v111, %v110
    %v127 = vpack.c.b16 %v113, %v112
    %v128 = vpack.c.b16 %v115, %v114
    %v129 = vpack.c.b16 %v117, %v116
    %v130 = vpack.c.b16 %v119, %v118
    %v131 = vpack.c.b16 %v121, %v120
    %v132 = vpack.c.b16 %v123, %v122
    %v133 = vpack.c.b16 %v125, %v124
    %142 = vmatprep.subr.bf16.mxu0 0
    %143 = vmatpush1.bf16.msra.mxu0 %v133
    %144 = vmatprep.subr.bf16.mxu0 0
    %145 = vmatpush1.bf16.msra.mxu0 %v132
    %146 = vmatprep.subr.bf16.mxu0 0
    %147 = vmatpush1.bf16.msra.mxu0 %v131
    %148 = vmatprep.subr.bf16.mxu0 0
    %149 = vmatpush1.bf16.msra.mxu0 %v130
    %150 = vmatprep.subr.bf16.mxu0 0
    %151 = vmatpush1.bf16.msra.mxu0 %v129
    %152 = vmatprep.subr.bf16.mxu0 0
    %153 = vmatpush1.bf16.msra.mxu0 %v128
    %154 = vmatprep.subr.bf16.mxu0 0
    %155 = vmatpush1.bf16.msra.mxu0 %v127
    %156 = vmatprep.subr.bf16.mxu0 0
    %157 = vmatpush1.bf16.msra.mxu0 %v126
    %158 = vmatprep.subr.bf16.mxu0 0
    %159 = vmatpush2.bf16.msra.mxu0 0
    %160 = vmatprep.subr.bf16.mxu0 0
    %161 = vmatpush2.bf16.msra.mxu0 0
    %162 = vmatprep.subr.bf16.mxu0 0
    %163 = vmatpush2.bf16.msra.mxu0 0
    %164 = vmatprep.subr.bf16.mxu0 0
    %165 = vmatpush2.bf16.msra.mxu0 0
    %166 = vmatprep.subr.bf16.mxu0 0
    %167 = vmatpush2.bf16.msra.mxu0 0
    %168 = vmatprep.subr.bf16.mxu0 0
    %169 = vmatpush2.bf16.msra.mxu0 0
    %170 = vmatprep.subr.bf16.mxu0 0
    %171 = vmatpush2.bf16.msra.mxu0 0
    %172 = vmatprep.subr.bf16.mxu0 0
    %173 = vmatpush2.bf16.msra.mxu0 0
    %174 = vmatprep.mubr.bf16.mxu0 0
    %175 = vmatmul.mubr.bf16.gmra.mxu0 %v92
    %v176 = vpop.f32.mrf.mxu0
    %v177 = vadd.f32 %v86, %v176
    %v178 = vpop.f32.mrf.mxu0
    %v179 = vpop.f32.mrf.mxu0
    %v180 = vadd.f32 %v86, %v179
    %v181 = vpop.f32.mrf.mxu0
    %182 = vdwg.mxu0
    %v183 = vmax.f32 %v177, 0.0
    %v184 = vmax.f32 %v180, 0.0
    %v185 = vpack.c.bf16 %v184, %v183
    %v186 = vld [vmem:[#allocation7] sm:$0xf]
    %v187 = vld [vmem:[#allocation7 + $0x4] sm:$0xf]
    %v188 = vld [vmem:[#allocation7 + $0x8] sm:$0xf]
    %v189 = vld [vmem:[#allocation7 + $0xc] sm:$0xf]
    %v190 = vld [vmem:[#allocation7 + $0x10] sm:$0xf]
    %v191 = vld [vmem:[#allocation7 + $0x14] sm:$0xf]
    %v192 = vld [vmem:[#allocation7 + $0x18] sm:$0xf]
    %v193 = vld [vmem:[#allocation7 + $0x1c] sm:$0xf]
    %v194 = vld [vmem:[#allocation7 + $0x20] sm:$0xf]
    %v195 = vld [vmem:[#allocation7 + $0x24] sm:$0xf]
    %v196 = vld [vmem:[#allocation7 + $0x28] sm:$0xf]
    %v197 = vld [vmem:[#allocation7 + $0x2c] sm:$0xf]
    %v198 = vld [vmem:[#allocation7 + $0x30] sm:$0xf]
    %v199 = vld [vmem:[#allocation7 + $0x34] sm:$0xf]
    %v200 = vld [vmem:[#allocation7 + $0x38] sm:$0xf]
    %v201 = vld [vmem:[#allocation7 + $0x3c] sm:$0xf]
    %v202 = vld [vmem:[%s4] sm:$0x1]
    %v204 = vlaneseq
    %v205 = vshrl.u32 %v204, 7
    %v206 = vsub.s32 0, %v205
    %v207 = vrot.slane %v202, %v206
    %v225 = vunpack.c.l.b16 %v186
    %v226 = vunpack.c.l.b16 %v187
    %v227 = vunpack.c.l.b16 %v188
    %v228 = vunpack.c.l.b16 %v189
    %v229 = vunpack.c.l.b16 %v190
    %v230 = vunpack.c.l.b16 %v191
    %v231 = vunpack.c.l.b16 %v192
    %v232 = vunpack.c.l.b16 %v193
    %v233 = vunpack.c.l.b16 %v194
    %v234 = vunpack.c.l.b16 %v195
    %v235 = vunpack.c.l.b16 %v196
    %v236 = vunpack.c.l.b16 %v197
    %v237 = vunpack.c.l.b16 %v198
    %v238 = vunpack.c.l.b16 %v199
    %v239 = vunpack.c.l.b16 %v200
    %v240 = vunpack.c.l.b16 %v201
    %v241 = vpack.c.b16 %v226, %v225
    %v242 = vpack.c.b16 %v228, %v227
    %v243 = vpack.c.b16 %v230, %v229
    %v244 = vpack.c.b16 %v232, %v231
    %v245 = vpack.c.b16 %v234, %v233
    %v246 = vpack.c.b16 %v236, %v235
    %v247 = vpack.c.b16 %v238, %v237
    %v248 = vpack.c.b16 %v240, %v239
    %257 = vmatprep.subr.bf16.mxu0 0
    %258 = vmatpush1.bf16.msra.mxu0 %v248
    %259 = vmatprep.subr.bf16.mxu0 0
    %260 = vmatpush1.bf16.msra.mxu0 %v247
    %261 = vmatprep.subr.bf16.mxu0 0
    %262 = vmatpush1.bf16.msra.mxu0 %v246
    %263 = vmatprep.subr.bf16.mxu0 0
    %264 = vmatpush1.bf16.msra.mxu0 %v245
    %265 = vmatprep.subr.bf16.mxu0 0
    %266 = vmatpush1.bf16.msra.mxu0 %v244
    %267 = vmatprep.subr.bf16.mxu0 0
    %268 = vmatpush1.bf16.msra.mxu0 %v243
    %269 = vmatprep.subr.bf16.mxu0 0
    %270 = vmatpush1.bf16.msra.mxu0 %v242
    %271 = vmatprep.subr.bf16.mxu0 0
    %272 = vmatpush1.bf16.msra.mxu0 %v241
    %273 = vmatprep.subr.bf16.mxu0 0
    %274 = vmatpush2.bf16.msra.mxu0 0
    %275 = vmatprep.subr.bf16.mxu0 0
    %276 = vmatpush2.bf16.msra.mxu0 0
    %277 = vmatprep.subr.bf16.mxu0 0
    %278 = vmatpush2.bf16.msra.mxu0 0
    %279 = vmatprep.subr.bf16.mxu0 0
    %280 = vmatpush2.bf16.msra.mxu0 0
    %281 = vmatprep.subr.bf16.mxu0 0
    %282 = vmatpush2.bf16.msra.mxu0 0
    %283 = vmatprep.subr.bf16.mxu0 0
    %284 = vmatpush2.bf16.msra.mxu0 0
    %285 = vmatprep.subr.bf16.mxu0 0
    %286 = vmatpush2.bf16.msra.mxu0 0
    %287 = vmatprep.subr.bf16.mxu0 0
    %288 = vmatpush2.bf16.msra.mxu0 0
    %289 = vmatprep.mubr.bf16.mxu0 0
    %290 = vmatmul.mubr.bf16.gmra.mxu0 %v185
    %v291 = vpop.f32.mrf.mxu0
    %v292 = vadd.f32 %v207, %v291
    %v293 = vpop.f32.mrf.mxu0
    %v294 = vpop.f32.mrf.mxu0
    %v295 = vadd.f32 %v207, %v294
    %v296 = vpop.f32.mrf.mxu0
    %297 = vdwg.mxu0
    %v298 = vmax.f32 %v292, 0.0
    %v299 = vmax.f32 %v295, 0.0
    %v300 = vpack.c.bf16 %v299, %v298
    %v302 = vunpack.c.l.b16 %v300
    %v303 = vunpack.c.h.b16 %v300
    %v304 = vpack.c.b16 %v302, %v302
    %v305 = vpack.c.b16 %v303, %v303
    %308 = vst [vmem:[#allocation8] sm:$0xf] %v304
    %309 = vst [vmem:[#allocation8 + $0x4] sm:$0xf] %v305
    // Predicated region
    $region34: #{tpu_custom_call.1} parent=1 // pred_check
      _
    $region35: #{tpu_custom_call.1} parent=1 // pred_check_branch
      %311 = sbr.rel (0) target = $region37
    $region36: #{tpu_custom_call.1} parent=1 // pred_region
      %s313 = ssub.s32 128, 128
      %314 = vsyncadd [#allocation4], %s313
      %s315 = sshll.u32 [#allocation8], 4
      %s316 = int_to_ptr.vmem [resolvable:$true] %s315
      %321 = dma.vmem_to_hbm [thread:$0]  %s316, 128, %s5, [#allocation4], 64, 64, 4
    $region37: #{tpu_custom_call.1} parent=1 // pred_fallthru
      _
    // Predicated region
    $region38: #{tpu_custom_call.1} parent=1 // pred_check
      _
    $region39: #{tpu_custom_call.1} parent=1 // pred_check_branch
      %323 = sbr.rel (0) target = $region41
    $region40: #{tpu_custom_call.1} parent=1 // pred_region
      %324 = dma.done [#allocation4], 128
    $region41: #{tpu_custom_call.1} parent=1 // pred_fallthru
      _
    %325 = vsyncpa [#allocation3], 1
    %326 = vsyncpa [#allocation6], 1
    %327 = vsyncpa [#allocation4], 1

</llo_original>
